<compile_context>
chip_gen: v5e
topology: v5e:2x2
jax: 0.10.0
libtpu: 0.0.40
codegen_flags: <defaults>
</compile_context>

<pallas_src>
import math

import jax
import jax.numpy as jnp
from jax import lax
from jax.experimental import pallas as pl
from jax.experimental.pallas import tpu as pltpu


def cnn1d_kernel(x_ref, w_ref, b_ref, s_ref, o_ref):
    # x_ref : (C_in, N)        N = TB * L_store  (lane-aligned, zero padded)
    # w_ref : (K, C_out, C_in) conv weight, tap-major
    # b_ref : (C_out, 1)       conv bias
    # s_ref : (N, TB)          pooling/selection matrix (1/L_out on valid cols)
    # o_ref : (1, C_out, TB)   pooled output tile for this batch block
    xv = x_ref[...]                                  # (C_in, N), input dtype
    n_taps, c_out, _ = w_ref.shape
    n_lanes = xv.shape[-1]

    acc = jnp.zeros((c_out, n_lanes), jnp.float32)
    for k in range(n_taps):                          # K is small & static
        # shifted view: xk[:, p] = xv[:, p + k]; wrap-around junk lands only on
        # positions that the pooling matrix zeroes out.
        xk = xv if k == 0 else pltpu.roll(xv, shift=n_lanes - k, axis=1)
        acc = acc + jnp.dot(w_ref[k], xk, preferred_element_type=jnp.float32)

    # bias + ReLU on the f32 accumulator (lane-dense VPU work)
    y = jnp.maximum(acc + b_ref[...].astype(jnp.float32), 0.0)

    # TODO(synk): nn.Dropout is stochastic in training mode; eval-mode identity here.

    # Masked mean over the valid conv positions of each batch slot, done as one
    # MXU matmul -> (C_out, TB) lane-dense pooled tile.
    pooled = jnp.dot(y, s_ref[...], preferred_element_type=jnp.float32)
    o_ref[0] = pooled.astype(o_ref.dtype)


def cnn1d_forward(x, weight, bias, *, stride=1, padding=1, batch_tile=8):
    """x: (B, C_in, L); weight: (C_out, C_in, K); bias: (C_out,).
    Returns (B, C_out, 1) float32, matching CNN1D.forward (eval mode)."""
    B, c_in, L = x.shape
    c_out, c_in_w, K = weight.shape
    assert c_in_w == c_in
    L_pad = L + 2 * padding
    out_len = (L_pad - K) // stride + 1
    assert out_len >= 1

    # Batch tiling: TB elements per grid step (>=2 steps when B allows, so both
    # v7x TensorCores get work).
    tb = max(1, min(B, batch_tile))
    n_steps = -(-B // tb)
    b_pad = n_steps * tb

    # Per-batch segment length rounded so the per-step lane width TB*L_store is
    # a multiple of 128 (lane-aligned MXU operands, no masked relayouts).
    q = 128 // math.gcd(tb, 128)
    l_store = -(-L_pad // q) * q
    n = tb * l_store

    # Single layout pass over x (also absorbs the conv zero padding):
    # (B, C_in, L) -> (C_in, b_pad * l_store), channel-major, batch*length flat.
    xt = jnp.transpose(x, (1, 0, 2))
    xt = jnp.pad(xt, ((0, 0), (0, b_pad - B), (padding, l_store - L - padding)))
    xl = xt.reshape(c_in, b_pad * l_store)

    w_t = jnp.transpose(weight, (2, 0, 1))            # (K, C_out, C_in)
    b_col = bias.reshape(c_out, 1)

    # Pooling/selection matrix S (N, TB): S[p, t] = 1/out_len iff flat position
    # p belongs to batch slot t and is a valid (stride-aligned) conv output.
    pidx = jnp.arange(n)
    seg = pidx // l_store
    loc = pidx % l_store
    valid = (loc % stride == 0) & (loc // stride < out_len)
    sel = (seg[:, None] == jnp.arange(tb)[None, :]) & valid[:, None]
    pool_mat = jnp.where(sel, jnp.float32(1.0 / out_len), jnp.float32(0.0))

    out = pl.pallas_call(
        cnn1d_kernel,
        out_shape=jax.ShapeDtypeStruct((n_steps, c_out, tb), jnp.float32),
        grid=(n_steps,),
        in_specs=[
            pl.BlockSpec((c_in, n), lambda i: (0, i)),
            pl.BlockSpec((K, c_out, c_in), lambda i: (0, 0, 0)),
            pl.BlockSpec((c_out, 1), lambda i: (0, 0)),
            pl.BlockSpec((n, tb), lambda i: (0, 0)),
        ],
        out_specs=pl.BlockSpec((1, c_out, tb), lambda i: (i, 0, 0)),
        compiler_params=pltpu.CompilerParams(
            dimension_semantics=("parallel",)),
    )(xl, w_t, b_col, pool_mat)

    # (n_steps, C_out, TB) -> (B, C_out, 1): free wrapper-side layout plumbing.
    out = jnp.transpose(out, (0, 2, 1)).reshape(b_pad, c_out)[:B]
    return out.reshape(B, c_out, 1)


def cnn1d_ref(x, weight, bias, *, stride=1, padding=1):
    """Pure-JAX reference mirroring the PyTorch module (eval mode)."""
    y = lax.conv_general_dilated(
        x.astype(jnp.float32), weight.astype(jnp.float32),
        window_strides=(stride,), padding=[(padding, padding)],
        dimension_numbers=("NCH", "OIH", "NCH"))
    y = y + bias.astype(jnp.float32)[None, :, None]
    y = jnp.maximum(y, 0.0)
    return jnp.mean(y, axis=-1, keepdims=True)


if __name__ == "__main__":
    key = jax.random.PRNGKey(0)
    kx, kw, kb, kx2 = jax.random.split(key, 4)

    C_IN, L = 4, 16
    C_OUT, K, STRIDE, PAD = 8, 3, 1, 1
    w = jax.random.normal(kw, (C_OUT, C_IN, K), dtype=jnp.float32) * 0.1
    b = jax.random.normal(kb, (C_OUT,), dtype=jnp.float32) * 0.1

    # Case 1: batch=2, single batch-tile (block == full array).
    x1 = jax.random.normal(kx, (2, C_IN, L), dtype=jnp.float32)
    out1 = jax.block_until_ready(cnn1d_forward(x1, w, b, stride=STRIDE, padding=PAD))
    ref1 = cnn1d_ref(x1, w, b, stride=STRIDE, padding=PAD)
    assert out1.shape == (2, C_OUT, 1), out1.shape
    assert jnp.allclose(out1, ref1, atol=1e-4, rtol=1e-4), (out1, ref1)

    # Case 2: batch=5 with batch_tile=2 -> 3 grid steps + padded batch slot.
    x2 = jax.random.normal(kx2, (5, C_IN, L), dtype=jnp.float32)
    out2 = jax.block_until_ready(
        cnn1d_forward(x2, w, b, stride=STRIDE, padding=PAD, batch_tile=2))
    ref2 = cnn1d_ref(x2, w, b, stride=STRIDE, padding=PAD)
    assert out2.shape == (5, C_OUT, 1), out2.shape
    assert jnp.allclose(out2, ref2, atol=1e-4, rtol=1e-4), (out2, ref2)

    print("KERNEL_OK")
</pallas_src>

<mosaic_0001>
module attributes {stable_mosaic.version = 11 : i64} {
  func.func @cnn1d_kernel(%arg0: i32, %arg1: memref<4x128xf32, #tpu.memory_space<vmem>>, %arg2: memref<3x8x4xf32, #tpu.memory_space<vmem>>, %arg3: memref<8x1xf32, #tpu.memory_space<vmem>>, %arg4: memref<128x2xf32, #tpu.memory_space<vmem>>, %arg5: memref<1x8x2xf32, #tpu.memory_space<vmem>>) attributes {dimension_semantics = [#tpu.dimension_semantics<parallel>], iteration_bounds = array<i64: 1>, scalar_prefetch = 0 : i64, scratch_operands = 0 : i64, tpu.core_type = #tpu.core_type<tc>, window_params = [{transform_indices = @transform_0, window_bounds = array<i64: 4, 128>}, {pipeline_mode = #tpu.pipeline_mode<synchronous>, transform_indices = @transform_1, window_bounds = array<i64: 3, 8, 4>}, {pipeline_mode = #tpu.pipeline_mode<synchronous>, transform_indices = @transform_2, window_bounds = array<i64: 8, 1>}, {pipeline_mode = #tpu.pipeline_mode<synchronous>, transform_indices = @transform_3, window_bounds = array<i64: 128, 2>}, {transform_indices = @transform_4, window_bounds = array<i64: 1, 8, 2>}]} {
    %c0 = arith.constant 0 : index
    %c0_0 = arith.constant 0 : index
    %0 = vector.load %arg1[%c0, %c0_0] : memref<4x128xf32, #tpu.memory_space<vmem>>, vector<4x128xf32>
    %cst = arith.constant 0.000000e+00 : f32
    %1 = vector.broadcast %cst : f32 to vector<8x128xf32>
    %c0_1 = arith.constant 0 : index
    %c0_2 = arith.constant 0 : index
    %c0_3 = arith.constant 0 : index
    %2 = vector.load %arg2[%c0_1, %c0_2, %c0_3] : memref<3x8x4xf32, #tpu.memory_space<vmem>>, vector<1x8x4xf32>
    %3 = vector.shape_cast %2 : vector<1x8x4xf32> to vector<8x4xf32>
    %cst_4 = arith.constant dense<0.000000e+00> : vector<8x128xf32>
    %4 = tpu.matmul %3, %0, %cst_4 {dimension_numbers = #tpu.dot_dimension_numbers<[1], [0], [0], [1], [0, 0, 1, 1], [], []>} : vector<8x4xf32>, vector<4x128xf32>, vector<8x128xf32> -> vector<8x128xf32>
    %5 = arith.addf %1, %4 : vector<8x128xf32>
    %c127_i32 = arith.constant 127 : i32
    %6 = tpu.dynamic_rotate %0 by %c127_i32 dim 1 : vector<4x128xf32>, i32 -> vector<4x128xf32>
    %c1 = arith.constant 1 : index
    %c0_5 = arith.constant 0 : index
    %c0_6 = arith.constant 0 : index
    %7 = vector.load %arg2[%c1, %c0_5, %c0_6] : memref<3x8x4xf32, #tpu.memory_space<vmem>>, vector<1x8x4xf32>
    %8 = vector.shape_cast %7 : vector<1x8x4xf32> to vector<8x4xf32>
    %cst_7 = arith.constant dense<0.000000e+00> : vector<8x128xf32>
    %9 = tpu.matmul %8, %6, %cst_7 {dimension_numbers = #tpu.dot_dimension_numbers<[1], [0], [0], [1], [0, 0, 1, 1], [], []>} : vector<8x4xf32>, vector<4x128xf32>, vector<8x128xf32> -> vector<8x128xf32>
    %10 = arith.addf %5, %9 : vector<8x128xf32>
    %c126_i32 = arith.constant 126 : i32
    %11 = tpu.dynamic_rotate %0 by %c126_i32 dim 1 : vector<4x128xf32>, i32 -> vector<4x128xf32>
    %c2 = arith.constant 2 : index
    %c0_8 = arith.constant 0 : index
    %c0_9 = arith.constant 0 : index
    %12 = vector.load %arg2[%c2, %c0_8, %c0_9] : memref<3x8x4xf32, #tpu.memory_space<vmem>>, vector<1x8x4xf32>
    %13 = vector.shape_cast %12 : vector<1x8x4xf32> to vector<8x4xf32>
    %cst_10 = arith.constant dense<0.000000e+00> : vector<8x128xf32>
    %14 = tpu.matmul %13, %11, %cst_10 {dimension_numbers = #tpu.dot_dimension_numbers<[1], [0], [0], [1], [0, 0, 1, 1], [], []>} : vector<8x4xf32>, vector<4x128xf32>, vector<8x128xf32> -> vector<8x128xf32>
    %15 = arith.addf %10, %14 : vector<8x128xf32>
    %c0_11 = arith.constant 0 : index
    %c0_12 = arith.constant 0 : index
    %16 = vector.load %arg3[%c0_11, %c0_12] : memref<8x1xf32, #tpu.memory_space<vmem>>, vector<8x1xf32>
    %17 = vector.broadcast %16 : vector<8x1xf32> to vector<8x128xf32>
    %18 = arith.addf %15, %17 : vector<8x128xf32>
    %cst_13 = arith.constant 0.000000e+00 : f32
    %19 = vector.broadcast %cst_13 : f32 to vector<8x128xf32>
    %20 = arith.maximumf %18, %19 : vector<8x128xf32>
    %c0_14 = arith.constant 0 : index
    %c0_15 = arith.constant 0 : index
    %21 = vector.load %arg4[%c0_14, %c0_15] : memref<128x2xf32, #tpu.memory_space<vmem>>, vector<128x2xf32>
    %cst_16 = arith.constant dense<0.000000e+00> : vector<8x2xf32>
    %22 = tpu.matmul %20, %21, %cst_16 {dimension_numbers = #tpu.dot_dimension_numbers<[1], [0], [0], [1], [0, 0, 1, 1], [], []>} : vector<8x128xf32>, vector<128x2xf32>, vector<8x2xf32> -> vector<8x2xf32>
    %c0_17 = arith.constant 0 : index
    %c0_18 = arith.constant 0 : index
    %c0_19 = arith.constant 0 : index
    %23 = vector.load %arg5[%c0_17, %c0_18, %c0_19] : memref<1x8x2xf32, #tpu.memory_space<vmem>>, vector<1x8x2xf32>
    %24 = vector.shape_cast %23 : vector<1x8x2xf32> to vector<8x2xf32>
    %25 = vector.shape_cast %22 : vector<8x2xf32> to vector<1x8x2xf32>
    tpu.vector_store %arg5[%c0_17, %c0_18, %c0_19], %25 {strides = array<i32>} : memref<1x8x2xf32, #tpu.memory_space<vmem>>, vector<1x8x2xf32>,
    return
  }
  func.func @transform_0(%arg0: i32) -> (i32, i32) {
    %c0_i32 = arith.constant 0 : i32
    %c0_i32_0 = arith.constant 0 : i32
    return %c0_i32, %arg0 : i32, i32
  }
  func.func @transform_1(%arg0: i32) -> (i32, i32, i32) {
    %c0_i32 = arith.constant 0 : i32
    %c0_i32_0 = arith.constant 0 : i32
    %c0_i32_1 = arith.constant 0 : i32
    %c0_i32_2 = arith.constant 0 : i32
    return %c0_i32, %c0_i32_0, %c0_i32_1 : i32, i32, i32
  }
  func.func @transform_2(%arg0: i32) -> (i32, i32) {
    %c0_i32 = arith.constant 0 : i32
    %c0_i32_0 = arith.constant 0 : i32
    %c0_i32_1 = arith.constant 0 : i32
    return %c0_i32, %c0_i32_0 : i32, i32
  }
  func.func @transform_3(%arg0: i32) -> (i32, i32) {
    %c0_i32 = arith.constant 0 : i32
    %c0_i32_0 = arith.constant 0 : i32
    %c0_i32_1 = arith.constant 0 : i32
    return %c0_i32, %c0_i32_0 : i32, i32
  }
  func.func @transform_4(%arg0: i32) -> (i32, i32, i32) {
    %c0_i32 = arith.constant 0 : i32
    %c0_i32_0 = arith.constant 0 : i32
    %c0_i32_1 = arith.constant 0 : i32
    return %arg0, %c0_i32, %c0_i32_0 : i32, i32, i32
  }
}

</mosaic_0001>

<llo_original>
// kernel: tpu_custom_call.1
$region0: #{tpu_custom_call.1}
  #allocation0 [shape = 'u32[]', space=smem, size = 0x4, offset = 0x4, fixed_abs, tag = 'smem constant byte address 0x4 - core index']
  #allocation1 [shape = 'u32[72,128]{1,0:T(1,128)}', space=vmem, size = 0x9000, scoped, tag = 'internal scratch']
  %s0 = inlined_call_operand.vmem [shape: f32[4,128], index: 0, kind: input, shape index: {}]
  %s1 = inlined_call_operand.vmem [shape: f32[3,8,4], index: 1, kind: input, shape index: {}]
  %s2 = inlined_call_operand.vmem [shape: f32[8,1], index: 2, kind: input, shape index: {}]
  %s3 = inlined_call_operand.vmem [shape: f32[128,2], index: 3, kind: input, shape index: {}]
  %s4 = inlined_call_operand.vmem [shape: f32[1,8,2], index: 4, kind: output, shape index: {}]
  %s5 = sld [smem:[#allocation0]]
  $region26: #{tpu_custom_call.1} parent=0
    _
  %s7 = ssub.s32 1, %s5
  %s8 = scalar_select 0, %s7, %s5
  // Predicated region
  $region2: #{tpu_custom_call.1} parent=0 // pred_check
    _
  $region3: #{tpu_custom_call.1} parent=0 // pred_check_branch
    %10 = sbr.rel (0) target = $region5
  $region4: #{tpu_custom_call.1} parent=0 // pred_region
    _
  $region5: #{tpu_custom_call.1} parent=0 // pred_fallthru
    _
  // Predicated region
  $region6: #{tpu_custom_call.1} parent=0 // pred_check
    _
  $region7: #{tpu_custom_call.1} parent=0 // pred_check_branch
    %12 = sbr.rel (0) target = $region9
  $region8: #{tpu_custom_call.1} parent=0 // pred_region
    _
  $region9: #{tpu_custom_call.1} parent=0 // pred_fallthru
    _
  // Predicated region
  $region10: #{tpu_custom_call.1} parent=0 // pred_check
    _
  $region11: #{tpu_custom_call.1} parent=0 // pred_check_branch
    %14 = sbr.rel (0) target = $region13
  $region12: #{tpu_custom_call.1} parent=0 // pred_region
    _
  $region13: #{tpu_custom_call.1} parent=0 // pred_fallthru
    _
  // Predicated region
  $region14: #{tpu_custom_call.1} parent=0 // pred_check
    _
  $region15: #{tpu_custom_call.1} parent=0 // pred_check_branch
    %16 = sbr.rel (0) target = $region17
  $region16: #{tpu_custom_call.1} parent=0 // pred_region
    _
  $region17: #{tpu_custom_call.1} parent=0 // pred_fallthru
    _
  %v17 = vld [vmem:[%s0] sm:$0xf]
  %v18 = vld [vmem:[%s1] sm:$0xff]
  %19 = vrot.lane.b32.xlu0 %v17, 127
  %v20 = vpop.permute.xlu0 %19
  %s21 = scalar_lea.vmem %s1, 8
  %v22 = vld [vmem:[%s21] sm:$0xff]
  %vm23 = vcmask 31744
  %v25 = vsel %vm23, %v22, 0
  %vm27 = vcmask 1043456
  %v29 = vsel %vm27, %v20, 0
  %31 = vmatpush.msra.mxu0 0.0
  %32 = vmatpush.msra.mxu0 0.0
  %33 = vmatpush.msra.mxu0 0.0
  %34 = vmatpush.msra.mxu0 0.0
  %35 = vmatpush.msra.mxu0 0.0
  %36 = vmatpush.msra.mxu0 0.0
  %37 = vmatpush.msra.mxu0 0.0
  %38 = vmatpush.msra.mxu0 0.0
  %39 = vmatpush.msra.mxu0 0.0
  %40 = vmatpush.msra.mxu0 0.0
  %41 = vmatpush.msra.mxu0 0.0
  %42 = vmatpush.msra.mxu0 0.0
  %43 = vmatpush.msra.mxu0 0.0
  %44 = vmatpush.msra.mxu0 0.0
  %45 = vmatpush.msra.mxu0 0.0
  %46 = vmatpush.msra.mxu0 %v29
  %47 = vmatmul.f32.gmra.mxu0 %v25
  %v48 = vpop.f32.mrf.mxu0
  %v49 = vadd.f32 0.0, %v48
  %50 = vdwg.mxu0
  %v52 = vsel %vm23, %v18, 0
  %v55 = vsel %vm27, %v17, 0
  %57 = vmatpush.msra.mxu0 0.0
  %58 = vmatpush.msra.mxu0 0.0
  %59 = vmatpush.msra.mxu0 0.0
  %60 = vmatpush.msra.mxu0 0.0
  %61 = vmatpush.msra.mxu0 0.0
  %62 = vmatpush.msra.mxu0 0.0
  %63 = vmatpush.msra.mxu0 0.0
  %64 = vmatpush.msra.mxu0 0.0
  %65 = vmatpush.msra.mxu0 0.0
  %66 = vmatpush.msra.mxu0 0.0
  %67 = vmatpush.msra.mxu0 0.0
  %68 = vmatpush.msra.mxu0 0.0
  %69 = vmatpush.msra.mxu0 0.0
  %70 = vmatpush.msra.mxu0 0.0
  %71 = vmatpush.msra.mxu0 0.0
  %72 = vmatpush.msra.mxu0 %v55
  %73 = vmatmul.f32.gmra.mxu0 %v52
  %v74 = vpop.f32.mrf.mxu0
  %v75 = vadd.f32 %v49, %v74
  %76 = vdwg.mxu0
  %77 = vrot.lane.b32.xlu0 %v17, 126
  %v78 = vpop.permute.xlu0 %77
  %s79 = scalar_lea.vmem %s1, 16
  %v80 = vld [vmem:[%s79] sm:$0xff]
  %v82 = vsel %vm23, %v80, 0
  %v85 = vsel %vm27, %v78, 0
  %87 = vmatpush.msra.mxu0 0.0
  %88 = vmatpush.msra.mxu0 0.0
  %89 = vmatpush.msra.mxu0 0.0
  %90 = vmatpush.msra.mxu0 0.0
  %91 = vmatpush.msra.mxu0 0.0
  %92 = vmatpush.msra.mxu0 0.0
  %93 = vmatpush.msra.mxu0 0.0
  %94 = vmatpush.msra.mxu0 0.0
  %95 = vmatpush.msra.mxu0 0.0
  %96 = vmatpush.msra.mxu0 0.0
  %97 = vmatpush.msra.mxu0 0.0
  %98 = vmatpush.msra.mxu0 0.0
  %99 = vmatpush.msra.mxu0 0.0
  %100 = vmatpush.msra.mxu0 0.0
  %101 = vmatpush.msra.mxu0 0.0
  %102 = vmatpush.msra.mxu0 %v85
  %103 = vmatmul.f32.gmra.mxu0 %v82
  %v104 = vpop.f32.mrf.mxu0
  %v105 = vadd.f32 0.0, %v104
  %106 = vdwg.mxu0
  %v107 = vadd.f32 %v75, %v105
  %v108 = vld [vmem:[%s2] sm:$0xff]
  %110 = vset.pattern.permute.xlu0 0
  %111 = vperm.xlu0 %110, %v108
  %v112 = vpop.permute.xlu0 %111
  %v114 = vadd.f32 %v107, %v112
  %v115 = vmax.f32 %v114, 0.0
  %v116 = vld [vmem:[%s3] sm:$0xff]
  %v117 = vld [vmem:[%s3 + $0x8] sm:$0xff]
  %v118 = vld [vmem:[%s3 + $0x10] sm:$0xff]
  %v119 = vld [vmem:[%s3 + $0x18] sm:$0xff]
  %v120 = vld [vmem:[%s3 + $0x20] sm:$0xff]
  %v121 = vld [vmem:[%s3 + $0x28] sm:$0xff]
  %v122 = vld [vmem:[%s3 + $0x30] sm:$0xff]
  %v123 = vld [vmem:[%s3 + $0x38] sm:$0xff]
  %v124 = vld [vmem:[%s3 + $0x40] sm:$0xff]
  %v125 = vld [vmem:[%s3 + $0x48] sm:$0xff]
  %v126 = vld [vmem:[%s3 + $0x50] sm:$0xff]
  %v127 = vld [vmem:[%s3 + $0x58] sm:$0xff]
  %v128 = vld [vmem:[%s3 + $0x60] sm:$0xff]
  %v129 = vld [vmem:[%s3 + $0x68] sm:$0xff]
  %v130 = vld [vmem:[%s3 + $0x70] sm:$0xff]
  %v131 = vld [vmem:[%s3 + $0x78] sm:$0xff]
  %132 = vmatpush.msra.mxu0 %v131
  %133 = vmatpush.msra.mxu0 %v130
  %134 = vmatpush.msra.mxu0 %v129
  %135 = vmatpush.msra.mxu0 %v128
  %136 = vmatpush.msra.mxu0 %v127
  %137 = vmatpush.msra.mxu0 %v126
  %138 = vmatpush.msra.mxu0 %v125
  %139 = vmatpush.msra.mxu0 %v124
  %140 = vmatpush.msra.mxu0 %v123
  %141 = vmatpush.msra.mxu0 %v122
  %142 = vmatpush.msra.mxu0 %v121
  %143 = vmatpush.msra.mxu0 %v120
  %144 = vmatpush.msra.mxu0 %v119
  %145 = vmatpush.msra.mxu0 %v118
  %146 = vmatpush.msra.mxu0 %v117
  %147 = vmatpush.msra.mxu0 %v116
  %148 = vmatmul.f32.gmra.mxu0 %v115
  %v149 = vpop.f32.mrf.mxu0
  %v150 = vadd.f32 0.0, %v149
  %151 = vdwg.mxu0
  %vm152 = vcmask 15360
  %153 = vst.msk [vmem:[%s4] sm:$0xff] %vm152, %v150
  // Predicated region
  $region18: #{tpu_custom_call.1} parent=0 // pred_check
    _
  $region19: #{tpu_custom_call.1} parent=0 // pred_check_branch
    %155 = sbr.rel (0) target = $region21
  $region20: #{tpu_custom_call.1} parent=0 // pred_region
    _
  $region21: #{tpu_custom_call.1} parent=0 // pred_fallthru
    _
  // Predicated region
  $region22: #{tpu_custom_call.1} parent=0 // pred_check
    _
  $region23: #{tpu_custom_call.1} parent=0 // pred_check_branch
    %157 = sbr.rel (0) target = $region25
  $region24: #{tpu_custom_call.1} parent=0 // pred_region
    _
  $region25: #{tpu_custom_call.1} parent=0 // pred_fallthru
    _

</llo_original>
